<compile_context>
chip_gen: v5e
topology: v5e:2x2
jax: 0.10.0
libtpu: 0.0.40
codegen_flags: <defaults>
</compile_context>

<pallas_src>
import jax
import jax.numpy as jnp
from jax import lax
from jax.experimental import pallas as pl
from jax.experimental.pallas import tpu as pltpu


# ----------------------------- fused kernel -------------------------------- #

def _leaky_relu(y, slope=0.1):
    return jnp.where(y > 0, y, slope * y)


def make_fused_kernel(n_lin1, n_gnn, n_lin2):
    """Build a fused forward kernel for a fixed layer structure.

    Kernel ref order:
      x_ref, a_ref,
      (w, b) for each linear_list1 layer,
      (w, b) for each gnn layer,
      (w, b) for each linear_list2 layer,
      o_ref
    """

    def kernel(*refs):
        x_ref, a_ref = refs[0], refs[1]
        param_refs = refs[2:-1]
        o_ref = refs[-1]

        x = x_ref[...]
        idx = 0

        # --- linear_list1: y = leaky_relu(x @ W + b) --- #
        for _ in range(n_lin1):
            w = param_refs[idx][...]
            b = param_refs[idx + 1][...]
            idx += 2
            x = _leaky_relu(
                jnp.dot(x, w, preferred_element_type=jnp.float32) + b)

        # --- gnn_list: x <- leaky_relu((D^-1/2 A D^-1/2 x) @ W + b) --- #
        if n_gnn > 0:
            A = a_ref[...]                                   # (N, N)
            d = jnp.sum(A, axis=-1, keepdims=True)           # (N, 1) row degree
            d_inv_sqrt = lax.rsqrt(d)                        # computed once
        for _ in range(n_gnn):
            w = param_refs[idx][...]
            b = param_refs[idx + 1][...]
            idx += 2
            # (D^-1/2 A D^-1/2) x  ==  d^-1/2 * (A @ (d^-1/2 * x))
            xa = d_inv_sqrt * jnp.dot(A, d_inv_sqrt * x,
                                      preferred_element_type=jnp.float32)
            x = _leaky_relu(
                jnp.dot(xa, w, preferred_element_type=jnp.float32) + b)

        # --- linear_list2: y = x @ W + b (no activation) --- #
        for _ in range(n_lin2):
            w = param_refs[idx][...]
            b = param_refs[idx + 1][...]
            idx += 2
            x = jnp.dot(x, w, preferred_element_type=jnp.float32) + b

        o_ref[...] = x

    return kernel


# ------------------------------- wrapper ------------------------------------ #

def _full_spec(shape):
    # grid=() -> index_map takes no args; block covers the whole array.
    return pl.BlockSpec(shape, lambda: (0,) * len(shape))


def model_forward(x, A, params, dropout=None):
    """Fused forward pass. dropout=None (eval-time nn.Dropout is identity)."""
    # TODO(synk): training-mode dropout (random masking) not implemented.
    n, _ = x.shape

    lin1 = params["linear_list1"]
    gnn = params["gnn_list"]
    lin2 = params["linear_list2"]

    flat_params = []
    for w, b in lin1 + gnn + lin2:
        flat_params.extend([w, b])

    all_layers = lin1 + gnn + lin2
    fout_final = all_layers[-1][0].shape[1]

    in_specs = [_full_spec(x.shape), _full_spec(A.shape)]
    for p in flat_params:
        in_specs.append(_full_spec(p.shape))

    kernel = make_fused_kernel(len(lin1), len(gnn), len(lin2))

    out = pl.pallas_call(
        kernel,
        out_shape=jax.ShapeDtypeStruct((n, fout_final), jnp.float32),
        in_specs=in_specs,
        out_specs=_full_spec((n, fout_final)),
    )(x, A, *flat_params)

    penalty_term = []
    return out, penalty_term


# ------------------------ deterministic param init ------------------------- #

def init_linear(key, fin, fout):
    # Mirror nn.Linear default init: U(-1/sqrt(fin), 1/sqrt(fin)).
    kw, kb = jax.random.split(key)
    bound = 1.0 / jnp.sqrt(jnp.float32(fin))
    # store W already transposed to (fin, fout) for the kernel
    w = jax.random.uniform(kw, (fin, fout), jnp.float32, -bound, bound)
    b = jax.random.uniform(kb, (1, fout), jnp.float32, -bound, bound)
    return w, b


def init_params(key, linear_list1, gnn_list, linear_list2):
    params = {"linear_list1": [], "gnn_list": [], "linear_list2": []}
    for i in range(len(linear_list1) - 1):
        key, sub = jax.random.split(key)
        params["linear_list1"].append(
            init_linear(sub, linear_list1[i], linear_list1[i + 1]))
    for i in range(len(gnn_list) - 1):
        key, sub = jax.random.split(key)
        params["gnn_list"].append(
            init_linear(sub, gnn_list[i], gnn_list[i + 1]))
    for i in range(len(linear_list2) - 1):
        key, sub = jax.random.split(key)
        params["linear_list2"].append(
            init_linear(sub, linear_list2[i], linear_list2[i + 1]))
    return params


# ------------------------------ reference ---------------------------------- #

def reference_forward(x, A, params):
    def lrelu(y):
        return jnp.where(y > 0, y, 0.1 * y)
    for w, b in params["linear_list1"]:
        x = lrelu(x @ w + b)
    d = jnp.sum(A, -1, keepdims=True) ** (-0.5)
    L = d * A * d.T
    for w, b in params["gnn_list"]:
        x = lrelu((L @ x) @ w + b)
    for w, b in params["linear_list2"]:
        x = x @ w + b
    return x


# -------------------------------- main -------------------------------------- #

if __name__ == "__main__":
    key = jax.random.PRNGKey(0)
    k_x, k_a, k_p = jax.random.split(key, 3)

    N = 8                      # number of graph nodes
    linear_list1 = [16, 32]    # MLP in
    gnn_list = [32, 32]        # GCN layers
    linear_list2 = [32, 4]     # MLP out

    x = jax.random.normal(k_x, (N, linear_list1[0]), jnp.float32)
    # positive adjacency so D^{-1/2} is well-defined
    A = jax.random.uniform(k_a, (N, N), jnp.float32, 0.1, 1.0)
    A = 0.5 * (A + A.T)

    params = init_params(k_p, linear_list1, gnn_list, linear_list2)

    out, penalty_term = model_forward(x, A, params, dropout=None)
    out = jax.block_until_ready(out)

    ref = reference_forward(x, A, params)
    assert out.shape == (N, linear_list2[-1])
    assert penalty_term == []
    assert jnp.allclose(out, ref, atol=1e-4, rtol=1e-4), "mismatch vs reference"

    print("KERNEL_OK")
</pallas_src>

<mosaic_0001>
module attributes {stable_mosaic.version = 11 : i64} {
  func.func @kernel(%arg0: memref<8x16xf32, #tpu.memory_space<vmem>>, %arg1: memref<8x8xf32, #tpu.memory_space<vmem>>, %arg2: memref<16x32xf32, #tpu.memory_space<vmem>>, %arg3: memref<1x32xf32, #tpu.memory_space<vmem>>, %arg4: memref<32x32xf32, #tpu.memory_space<vmem>>, %arg5: memref<1x32xf32, #tpu.memory_space<vmem>>, %arg6: memref<32x4xf32, #tpu.memory_space<vmem>>, %arg7: memref<1x4xf32, #tpu.memory_space<vmem>>, %arg8: memref<8x4xf32, #tpu.memory_space<vmem>>) attributes {dimension_semantics = [], scalar_prefetch = 0 : i64, scratch_operands = 0 : i64, tpu.core_type = #tpu.core_type<tc>} {
    %c0 = arith.constant 0 : index
    %c0_0 = arith.constant 0 : index
    %0 = vector.load %arg0[%c0, %c0_0] : memref<8x16xf32, #tpu.memory_space<vmem>>, vector<8x16xf32>
    %c0_1 = arith.constant 0 : index
    %c0_2 = arith.constant 0 : index
    %1 = vector.load %arg2[%c0_1, %c0_2] : memref<16x32xf32, #tpu.memory_space<vmem>>, vector<16x32xf32>
    %c0_3 = arith.constant 0 : index
    %c0_4 = arith.constant 0 : index
    %2 = vector.load %arg3[%c0_3, %c0_4] : memref<1x32xf32, #tpu.memory_space<vmem>>, vector<1x32xf32>
    %cst = arith.constant dense<0.000000e+00> : vector<8x32xf32>
    %3 = tpu.matmul %0, %1, %cst {dimension_numbers = #tpu.dot_dimension_numbers<[1], [0], [0], [1], [0, 0, 1, 1], [], []>} : vector<8x16xf32>, vector<16x32xf32>, vector<8x32xf32> -> vector<8x32xf32>
    %4 = vector.broadcast %2 : vector<1x32xf32> to vector<8x32xf32>
    %5 = arith.addf %3, %4 : vector<8x32xf32>
    %cst_5 = arith.constant 0.000000e+00 : f32
    %6 = vector.broadcast %cst_5 : f32 to vector<8x32xf32>
    %7 = arith.cmpf ogt, %5, %6 : vector<8x32xf32>
    %cst_6 = arith.constant 1.000000e-01 : f32
    %8 = vector.broadcast %cst_6 : f32 to vector<8x32xf32>
    %9 = arith.mulf %8, %5 : vector<8x32xf32>
    %10 = arith.select %7, %5, %9 : vector<8x32xi1>, vector<8x32xf32>
    %c0_7 = arith.constant 0 : index
    %c0_8 = arith.constant 0 : index
    %11 = vector.load %arg1[%c0_7, %c0_8] : memref<8x8xf32, #tpu.memory_space<vmem>>, vector<8x8xf32>
    %cst_9 = arith.constant dense<0.000000e+00> : vector<8xf32>
    %12 = vector.multi_reduction <add>, %11, %cst_9 [1] : vector<8x8xf32> to vector<8xf32>
    %13 = vector.shape_cast %12 : vector<8xf32> to vector<8x1xf32>
    %14 = math.rsqrt %13 : vector<8x1xf32>
    %c0_10 = arith.constant 0 : index
    %c0_11 = arith.constant 0 : index
    %15 = vector.load %arg4[%c0_10, %c0_11] : memref<32x32xf32, #tpu.memory_space<vmem>>, vector<32x32xf32>
    %c0_12 = arith.constant 0 : index
    %c0_13 = arith.constant 0 : index
    %16 = vector.load %arg5[%c0_12, %c0_13] : memref<1x32xf32, #tpu.memory_space<vmem>>, vector<1x32xf32>
    %17 = vector.broadcast %14 : vector<8x1xf32> to vector<8x32xf32>
    %18 = arith.mulf %17, %10 : vector<8x32xf32>
    %cst_14 = arith.constant dense<0.000000e+00> : vector<8x32xf32>
    %19 = tpu.matmul %11, %18, %cst_14 {dimension_numbers = #tpu.dot_dimension_numbers<[1], [0], [0], [1], [0, 0, 1, 1], [], []>} : vector<8x8xf32>, vector<8x32xf32>, vector<8x32xf32> -> vector<8x32xf32>
    %20 = vector.broadcast %14 : vector<8x1xf32> to vector<8x32xf32>
    %21 = arith.mulf %20, %19 : vector<8x32xf32>
    %cst_15 = arith.constant dense<0.000000e+00> : vector<8x32xf32>
    %22 = tpu.matmul %21, %15, %cst_15 {dimension_numbers = #tpu.dot_dimension_numbers<[1], [0], [0], [1], [0, 0, 1, 1], [], []>} : vector<8x32xf32>, vector<32x32xf32>, vector<8x32xf32> -> vector<8x32xf32>
    %23 = vector.broadcast %16 : vector<1x32xf32> to vector<8x32xf32>
    %24 = arith.addf %22, %23 : vector<8x32xf32>
    %cst_16 = arith.constant 0.000000e+00 : f32
    %25 = vector.broadcast %cst_16 : f32 to vector<8x32xf32>
    %26 = arith.cmpf ogt, %24, %25 : vector<8x32xf32>
    %cst_17 = arith.constant 1.000000e-01 : f32
    %27 = vector.broadcast %cst_17 : f32 to vector<8x32xf32>
    %28 = arith.mulf %27, %24 : vector<8x32xf32>
    %29 = arith.select %26, %24, %28 : vector<8x32xi1>, vector<8x32xf32>
    %c0_18 = arith.constant 0 : index
    %c0_19 = arith.constant 0 : index
    %30 = vector.load %arg6[%c0_18, %c0_19] : memref<32x4xf32, #tpu.memory_space<vmem>>, vector<32x4xf32>
    %c0_20 = arith.constant 0 : index
    %c0_21 = arith.constant 0 : index
    %31 = vector.load %arg7[%c0_20, %c0_21] : memref<1x4xf32, #tpu.memory_space<vmem>>, vector<1x4xf32>
    %cst_22 = arith.constant dense<0.000000e+00> : vector<8x4xf32>
    %32 = tpu.matmul %29, %30, %cst_22 {dimension_numbers = #tpu.dot_dimension_numbers<[1], [0], [0], [1], [0, 0, 1, 1], [], []>} : vector<8x32xf32>, vector<32x4xf32>, vector<8x4xf32> -> vector<8x4xf32>
    %33 = vector.broadcast %31 : vector<1x4xf32> to vector<8x4xf32>
    %34 = arith.addf %32, %33 : vector<8x4xf32>
    %c0_23 = arith.constant 0 : index
    %c0_24 = arith.constant 0 : index
    %35 = vector.load %arg8[%c0_23, %c0_24] : memref<8x4xf32, #tpu.memory_space<vmem>>, vector<8x4xf32>
    tpu.vector_store %arg8[%c0_23, %c0_24], %34 {strides = array<i32>} : memref<8x4xf32, #tpu.memory_space<vmem>>, vector<8x4xf32>,
    return
  }
}

</mosaic_0001>

<llo_original>
// kernel: tpu_custom_call.1
$region0: #{tpu_custom_call.1}
  #allocation0 [shape = 'u32[]', space=smem, size = 0x4, offset = 0x4, fixed_abs, tag = 'smem constant byte address 0x4 - core index']
  #allocation1 [shape = 'u32[72,128]{1,0:T(1,128)}', space=vmem, size = 0x9000, scoped, tag = 'internal scratch']
  %s0 = inlined_call_operand.hbm [shape: f32[8,16], index: 0, kind: input, shape index: {}]
  %s1 = inlined_call_operand.hbm [shape: f32[8,8], index: 1, kind: input, shape index: {}]
  %s2 = inlined_call_operand.hbm [shape: f32[16,32], index: 2, kind: input, shape index: {}]
  %s3 = inlined_call_operand.vmem [shape: f32[1,32], index: 3, kind: input, shape index: {}]
  %s4 = inlined_call_operand.vmem [shape: f32[32,32], index: 4, kind: input, shape index: {}]
  %s5 = inlined_call_operand.vmem [shape: f32[1,32], index: 5, kind: input, shape index: {}]
  %s6 = inlined_call_operand.vmem [shape: f32[32,4], index: 6, kind: input, shape index: {}]
  %s7 = inlined_call_operand.vmem [shape: f32[1,4], index: 7, kind: input, shape index: {}]
  %s8 = inlined_call_operand.vmem [shape: f32[8,4], index: 8, kind: output, shape index: {}]
  %s9 = sld [smem:[#allocation0]]
  $region54: #{tpu_custom_call.1} parent=0
    _
  %s11 = ssub.s32 1, %s9
  %s12 = scalar_select 0, %s11, %s9
  $region1: #{tpu_custom_call.1} parent=0
    #allocation2 [shape = 'u8[4096]{0}', space=vmem, size = 0x1000, scoped, tag = 'input window, operand 0, single buffered']
    #allocation3 [shape = 's32[1]{0}', space=sflag, size = 0x4, scoped, tag = 'scoped memory for tpu_custom_call.1']
    #allocation4 [shape = 'u8[4096]{0}', space=vmem, size = 0x1000, scoped, tag = 'input window, operand 1, single buffered']
    #allocation5 [shape = 's32[1]{0}', space=sflag, size = 0x4, scoped, tag = 'scoped memory for tpu_custom_call.1']
    #allocation6 [shape = 'u8[8192]{0}', space=vmem, size = 0x2000, scoped, tag = 'input window, operand 2, single buffered']
    %13 = vsyncpa [#allocation3], 0
    %14 = vsyncpa [#allocation5], 0
    // Predicated region
    $region2: #{tpu_custom_call.1} parent=1 // pred_check
      _
    $region3: #{tpu_custom_call.1} parent=1 // pred_check_branch
      %16 = sbr.rel (0) target = $region5
    $region4: #{tpu_custom_call.1} parent=1 // pred_region
      %18 = vsyncadd [#allocation3], 0
      %s20 = sshll.u32 %s0, 4
      %s21 = int_to_ptr.hbm [resolvable:$true] %s20
      %s22 = sshll.u32 [#allocation2], 4
      %s23 = int_to_ptr.vmem [resolvable:$true] %s22
      %25 = dma.hbm_to_vmem [thread:$0]  %s21, 128, %s23, [#allocation3]
    $region5: #{tpu_custom_call.1} parent=1 // pred_fallthru
      _
    // Predicated region
    $region6: #{tpu_custom_call.1} parent=1 // pred_check
      _
    $region7: #{tpu_custom_call.1} parent=1 // pred_check_branch
      %27 = sbr.rel (0) target = $region9
    $region8: #{tpu_custom_call.1} parent=1 // pred_region
      %29 = vsyncadd [#allocation5], 0
      %s31 = sshll.u32 %s1, 4
      %s32 = int_to_ptr.hbm [resolvable:$true] %s31
      %s33 = sshll.u32 [#allocation4], 4
      %s34 = int_to_ptr.vmem [resolvable:$true] %s33
      %36 = dma.hbm_to_vmem [thread:$0]  %s32, 128, %s34, [#allocation5]
    $region9: #{tpu_custom_call.1} parent=1 // pred_fallthru
      _
    // Predicated region
    $region10: #{tpu_custom_call.1} parent=1 // pred_check
      _
    $region11: #{tpu_custom_call.1} parent=1 // pred_check_branch
      %38 = sbr.rel (0) target = $region13
    $region12: #{tpu_custom_call.1} parent=1 // pred_region
      %40 = vsyncadd [#allocation5], 0
      %s41 = sshll.u32 %s2, 4
      %s42 = int_to_ptr.hbm [resolvable:$true] %s41
      %s43 = sshll.u32 [#allocation6], 4
      %s44 = int_to_ptr.vmem [resolvable:$true] %s43
      %49 = dma.hbm_to_vmem [thread:$0]  %s42, 256, %s44, [#allocation5], 128, 128, 8
    $region13: #{tpu_custom_call.1} parent=1 // pred_fallthru
      _
    // Predicated region
    $region14: #{tpu_custom_call.1} parent=1 // pred_check
      _
    $region15: #{tpu_custom_call.1} parent=1 // pred_check_branch
      %51 = sbr.rel (0) target = $region17
    $region16: #{tpu_custom_call.1} parent=1 // pred_region
      _
    $region17: #{tpu_custom_call.1} parent=1 // pred_fallthru
      _
    // Predicated region
    $region18: #{tpu_custom_call.1} parent=1 // pred_check
      _
    $region19: #{tpu_custom_call.1} parent=1 // pred_check_branch
      %53 = sbr.rel (0) target = $region21
    $region20: #{tpu_custom_call.1} parent=1 // pred_region
      _
    $region21: #{tpu_custom_call.1} parent=1 // pred_fallthru
      _
    // Predicated region
    $region22: #{tpu_custom_call.1} parent=1 // pred_check
      _
    $region23: #{tpu_custom_call.1} parent=1 // pred_check_branch
      %55 = sbr.rel (0) target = $region25
    $region24: #{tpu_custom_call.1} parent=1 // pred_region
      _
    $region25: #{tpu_custom_call.1} parent=1 // pred_fallthru
      _
    // Predicated region
    $region26: #{tpu_custom_call.1} parent=1 // pred_check
      _
    $region27: #{tpu_custom_call.1} parent=1 // pred_check_branch
      %57 = sbr.rel (0) target = $region29
    $region28: #{tpu_custom_call.1} parent=1 // pred_region
      _
    $region29: #{tpu_custom_call.1} parent=1 // pred_fallthru
      _
    // Predicated region
    $region30: #{tpu_custom_call.1} parent=1 // pred_check
      _
    $region31: #{tpu_custom_call.1} parent=1 // pred_check_branch
      %59 = sbr.rel (0) target = $region33
    $region32: #{tpu_custom_call.1} parent=1 // pred_region
      _
    $region33: #{tpu_custom_call.1} parent=1 // pred_fallthru
      _
    // Predicated region
    $region34: #{tpu_custom_call.1} parent=1 // pred_check
      _
    $region35: #{tpu_custom_call.1} parent=1 // pred_check_branch
      %61 = sbr.rel (0) target = $region37
    $region36: #{tpu_custom_call.1} parent=1 // pred_region
      %63 = dma.done [#allocation3], 128
    $region37: #{tpu_custom_call.1} parent=1 // pred_fallthru
      _
    // Predicated region
    $region38: #{tpu_custom_call.1} parent=1 // pred_check
      _
    $region39: #{tpu_custom_call.1} parent=1 // pred_check_branch
      %65 = sbr.rel (0) target = $region41
    $region40: #{tpu_custom_call.1} parent=1 // pred_region
      %67 = dma.done [#allocation5], 128
    $region41: #{tpu_custom_call.1} parent=1 // pred_fallthru
      _
    // Predicated region
    $region42: #{tpu_custom_call.1} parent=1 // pred_check
      _
    $region43: #{tpu_custom_call.1} parent=1 // pred_check_branch
      %69 = sbr.rel (0) target = $region45
    $region44: #{tpu_custom_call.1} parent=1 // pred_region
      %71 = dma.done [#allocation5], 256
    $region45: #{tpu_custom_call.1} parent=1 // pred_fallthru
      _
    %v72 = vld [vmem:[#allocation2] sm:$0xff]
    %v73 = vld [vmem:[#allocation6] sm:$0xff]
    %v74 = vld [vmem:[#allocation6 + $0x8] sm:$0xff]
    %v75 = vld [vmem:[%s3] sm:$0x1]
    %v77 = vperm.slane %v75, 0
    %vm79 = vcmask 130048
    %v81 = vsel %vm79, %v72, 0
    %83 = vmatpush.msra.mxu0 0.0
    %84 = vmatpush.msra.mxu0 0.0
    %85 = vmatpush.msra.mxu0 0.0
    %86 = vmatpush.msra.mxu0 0.0
    %87 = vmatpush.msra.mxu0 0.0
    %88 = vmatpush.msra.mxu0 0.0
    %89 = vmatpush.msra.mxu0 0.0
    %90 = vmatpush.msra.mxu0 0.0
    %91 = vmatpush.msra.mxu0 0.0
    %92 = vmatpush.msra.mxu0 0.0
    %93 = vmatpush.msra.mxu0 0.0
    %94 = vmatpush.msra.mxu0 0.0
    %95 = vmatpush.msra.mxu0 0.0
    %96 = vmatpush.msra.mxu0 0.0
    %97 = vmatpush.msra.mxu0 %v74
    %98 = vmatpush.msra.mxu0 %v73
    %99 = vmatmul.f32.gmra.mxu0 %v81
    %v100 = vpop.f32.mrf.mxu0
    %v101 = vadd.f32 %v77, %v100
    %102 = vdwg.mxu0
    %vm103 = vcmp.gt.f32.partialorder %v101, 0.0
    %v104 = vmul.f32 %v101, 0.1
    %v105 = vsel %vm103, %v101, %v104
    %v106 = vld [vmem:[#allocation4] sm:$0xff]
    %vm107 = vcmask 64512
    %v108 = vsel %vm107, %v106, 0.0
    %109 = vadd.xlane.f32.xlu0 %v108
    %v110 = vpop.xlane.xlu0 %109
    %v111 = vrsqrt.pop %v110
    %v112 = vmul.f32 %v111, %v110
    %v113 = vmul.f32 %v112, %v111
    %v114 = vmul.f32 0.5, %v113
    %v115 = vsub.f32 1.5, %v114
    %v116 = vmul.f32 %v111, %v115
    %vm117 = vweird.f32 %v110
    %vm118 = vweird.f32 %v111
    %vm119 = vmor %vm117, %vm118
    %v120 = vsel %vm119, %v111, %v116
    %v121 = vld [vmem:[%s4] sm:$0xff]
    %v122 = vld [vmem:[%s4 + $0x8] sm:$0xff]
    %v123 = vld [vmem:[%s4 + $0x10] sm:$0xff]
    %v124 = vld [vmem:[%s4 + $0x18] sm:$0xff]
    %v125 = vld [vmem:[%s5] sm:$0x1]
    %v126 = vmul.f32 %v120, %v105
    %v128 = vsel %vm107, %v106, 0
    %130 = vmatpush.msra.mxu0 0.0
    %131 = vmatpush.msra.mxu0 0.0
    %132 = vmatpush.msra.mxu0 0.0
    %133 = vmatpush.msra.mxu0 0.0
    %134 = vmatpush.msra.mxu0 0.0
    %135 = vmatpush.msra.mxu0 0.0
    %136 = vmatpush.msra.mxu0 0.0
    %137 = vmatpush.msra.mxu0 0.0
    %138 = vmatpush.msra.mxu0 0.0
    %139 = vmatpush.msra.mxu0 0.0
    %140 = vmatpush.msra.mxu0 0.0
    %141 = vmatpush.msra.mxu0 0.0
    %142 = vmatpush.msra.mxu0 0.0
    %143 = vmatpush.msra.mxu0 0.0
    %144 = vmatpush.msra.mxu0 0.0
    %145 = vmatpush.msra.mxu0 %v126
    %146 = vmatmul.f32.gmra.mxu0 %v128
    %v147 = vpop.f32.mrf.mxu0
    %v148 = vadd.f32 0.0, %v147
    %149 = vdwg.mxu0
    %v150 = vmul.f32 %v120, %v148
    %v152 = vperm.slane %v125, 0
    %vm154 = vcmask 261120
    %v156 = vsel %vm154, %v150, 0
    %158 = vmatpush.msra.mxu0 0.0
    %159 = vmatpush.msra.mxu0 0.0
    %160 = vmatpush.msra.mxu0 0.0
    %161 = vmatpush.msra.mxu0 0.0
    %162 = vmatpush.msra.mxu0 0.0
    %163 = vmatpush.msra.mxu0 0.0
    %164 = vmatpush.msra.mxu0 0.0
    %165 = vmatpush.msra.mxu0 0.0
    %166 = vmatpush.msra.mxu0 0.0
    %167 = vmatpush.msra.mxu0 0.0
    %168 = vmatpush.msra.mxu0 0.0
    %169 = vmatpush.msra.mxu0 0.0
    %170 = vmatpush.msra.mxu0 %v124
    %171 = vmatpush.msra.mxu0 %v123
    %172 = vmatpush.msra.mxu0 %v122
    %173 = vmatpush.msra.mxu0 %v121
    %174 = vmatmul.f32.gmra.mxu0 %v156
    %v175 = vpop.f32.mrf.mxu0
    %v176 = vadd.f32 %v152, %v175
    %177 = vdwg.mxu0
    %vm178 = vcmp.gt.f32.partialorder %v176, 0.0
    %v179 = vmul.f32 %v176, 0.1
    %v180 = vsel %vm178, %v176, %v179
    %v181 = vld [vmem:[%s6] sm:$0xff]
    %v182 = vld [vmem:[%s6 + $0x8] sm:$0xff]
    %v183 = vld [vmem:[%s6 + $0x10] sm:$0xff]
    %v184 = vld [vmem:[%s6 + $0x18] sm:$0xff]
    %v185 = vld [vmem:[%s7] sm:$0x1]
    %v187 = vperm.slane %v185, 0
    %v190 = vsel %vm154, %v180, 0
    %192 = vmatpush.msra.mxu0 0.0
    %193 = vmatpush.msra.mxu0 0.0
    %194 = vmatpush.msra.mxu0 0.0
    %195 = vmatpush.msra.mxu0 0.0
    %196 = vmatpush.msra.mxu0 0.0
    %197 = vmatpush.msra.mxu0 0.0
    %198 = vmatpush.msra.mxu0 0.0
    %199 = vmatpush.msra.mxu0 0.0
    %200 = vmatpush.msra.mxu0 0.0
    %201 = vmatpush.msra.mxu0 0.0
    %202 = vmatpush.msra.mxu0 0.0
    %203 = vmatpush.msra.mxu0 0.0
    %204 = vmatpush.msra.mxu0 %v184
    %205 = vmatpush.msra.mxu0 %v183
    %206 = vmatpush.msra.mxu0 %v182
    %207 = vmatpush.msra.mxu0 %v181
    %208 = vmatmul.f32.gmra.mxu0 %v190
    %v209 = vpop.f32.mrf.mxu0
    %v210 = vadd.f32 %v187, %v209
    %211 = vdwg.mxu0
    %vm212 = vcmask 31744
    %213 = vst.msk [vmem:[%s8] sm:$0xff] %vm212, %v210
    // Predicated region
    $region46: #{tpu_custom_call.1} parent=1 // pred_check
      _
    $region47: #{tpu_custom_call.1} parent=1 // pred_check_branch
      %215 = sbr.rel (0) target = $region49
    $region48: #{tpu_custom_call.1} parent=1 // pred_region
      _
    $region49: #{tpu_custom_call.1} parent=1 // pred_fallthru
      _
    // Predicated region
    $region50: #{tpu_custom_call.1} parent=1 // pred_check
      _
    $region51: #{tpu_custom_call.1} parent=1 // pred_check_branch
      %217 = sbr.rel (0) target = $region53
    $region52: #{tpu_custom_call.1} parent=1 // pred_region
      _
    $region53: #{tpu_custom_call.1} parent=1 // pred_fallthru
      _
    %218 = vsyncpa [#allocation3], 1
    %219 = vsyncpa [#allocation5], 1

</llo_original>
